<compile_context>
chip_gen: v6e
topology: v6e:2x2x1
jax: 0.10.0
libtpu: 0.0.40
codegen_flags: <defaults>
</compile_context>

<pallas_src>
import jax
import jax.numpy as jnp
from jax.experimental import pallas as pl
from jax.experimental.pallas import tpu as pltpu


def depcrf_kernel(mapper_t_ref, hid_ref, w_aug_ref, w_bil_ref, out_ref):
    """One grid step processes `bt` batch elements.

    mapper_t_ref: (bt, A, C) bf16   mapper pre-transposed in the wrapper
    hid_ref:      (bt, C, H) bf16
    w_aug_ref:    (H, H+1)   bf16   [linear.weight | root] (root folded as a column)
    w_bil_ref:    (H, H)     bf16
    out_ref:      (bt, N, N) f32    N = A - 2
    """
    bt, a, _ = mapper_t_ref.shape
    h = hid_ref.shape[-1]
    n = a - 2

    w_aug = w_aug_ref[...]          # (H, H+1)
    w_bil = w_bil_ref[...]          # (H, H)

    # out[b] = einsum('ca,ch->ah', mapper[b], hidden[b]).  mapper was transposed
    # in the wrapper so this is a plain (1,0) contraction (no in-kernel .T).
    outs = []
    for b in range(bt):                                   # bt is static -> unrolled
        out_b = jax.lax.dot_general(
            mapper_t_ref[b], hid_ref[b],
            dimension_numbers=(((1,), (0,)), ((), ())),
            preferred_element_type=jnp.float32)           # (A, H), f32 accumulation
        outs.append(out_b.astype(jnp.bfloat16))
    # Stack all bt batches along rows -> one large M = bt*A matmul per weight.
    out2d = outs[0] if bt == 1 else jnp.concatenate(outs, axis=0)     # (bt*A, H)

    # final2 (+ root score as column H) and bilinear projection: single big matmuls.
    f2_aug = jax.lax.dot_general(out2d, w_aug, (((1,), (0,)), ((), ())),
                                 preferred_element_type=jnp.float32)  # (bt*A, H+1)
    tmp = jax.lax.dot_general(out2d, w_bil, (((1,), (0,)), ((), ())),
                              preferred_element_type=jnp.float32)     # (bt*A, H)

    # Diagonal mask hoisted out of the per-batch loop.
    row = jax.lax.broadcasted_iota(jnp.int32, (n, n), 0)
    col = jax.lax.broadcasted_iota(jnp.int32, (n, n), 1)
    diag = row == col

    # Per-batch bilinear on the interior word positions only (operand-side,
    # sublane-only slices -> the (N, N) tile is produced directly).
    for b in range(bt):
        lo = b * a + 1
        tmp_b = tmp[lo:lo + n, :].astype(jnp.bfloat16)                # (N, H)
        f2_b = f2_aug[lo:lo + n, :h].astype(jnp.bfloat16)             # (N, H)
        rs_b = f2_aug[lo:lo + n, h:h + 1]                             # (N, 1) f32
        # full[n, m] = sum_h tmp[n, h] * final2[m, h]   (contract last dims, no .T)
        full = jax.lax.dot_general(tmp_b, f2_b, (((1,), (1,)), ((), ())),
                                   preferred_element_type=jnp.float32)  # (N, N)
        out_ref[b] = full + jnp.where(diag, rs_b, 0.0)


def depcrf_forward(mapper, hidden, w_lin, w_bil, root, *, bt=None):
    """Arc-score head of `Model.forward` (BERT encoder + dropout excluded).

    mapper: (B, C, A), hidden: (B, C, H), w_lin/w_bil: (H, H), root: (H,)
    returns (B, A-2, A-2) float32.
    """
    B, C, A = mapper.shape
    _, _, H = hidden.shape
    N = A - 2

    if bt is None:
        # Fill the MXU M dimension (~256 rows on v6e/v7x) but keep >= 2 parallel
        # grid steps when B allows, so both v7x TensorCores get work.
        divisors = [d for d in range(1, B + 1) if B % d == 0]
        target = max(1, 256 // max(A, 1))
        bt = max([d for d in divisors if d <= target], default=1)
        if B // bt < 2:
            smaller = [d for d in divisors if B // d >= 2]
            if smaller:
                bt = max(smaller)
    assert B % bt == 0, (B, bt)

    # Layout plumbing kept in the wrapper (cheap XLA ops, no in-kernel XLU work):
    #  - pre-transpose mapper so the kernel's first dot contracts plain (1,0) dims,
    #  - fold `root` into the linear weight as one extra output column,
    #  - bf16 operands into the MXU; accumulation stays f32 inside the kernel.
    mapper_t = jnp.swapaxes(mapper, 1, 2).astype(jnp.bfloat16)        # (B, A, C)
    hidden_bf = hidden.astype(jnp.bfloat16)
    w_aug = jnp.concatenate([w_lin, root.reshape(H, 1)], axis=1).astype(jnp.bfloat16)
    w_bil_bf = w_bil.astype(jnp.bfloat16)

    # NOTE: for production shapes (A ~ multiple of 128) pad the output last dim
    # to a multiple of 128 and slice in the wrapper for fully lane-dense stores.
    # TODO(synk): for production BERT shapes (H=768, C~512) set vmem_limit_bytes
    #             per generation (v7x has 64 MiB VMEM vs 128 MiB on v5e/v6e).
    return pl.pallas_call(
        depcrf_kernel,
        out_shape=jax.ShapeDtypeStruct((B, N, N), jnp.float32),
        grid_spec=pltpu.PrefetchScalarGridSpec(
            num_scalar_prefetch=0,
            grid=(B // bt,),
            in_specs=[
                pl.BlockSpec((bt, A, C), lambda i: (i, 0, 0)),
                pl.BlockSpec((bt, C, H), lambda i: (i, 0, 0)),
                # Weight blocks are grid-constant (index_map always (0, 0)),
                # so Pallas fetches them once.
                pl.BlockSpec((H, H + 1), lambda i: (0, 0)),
                pl.BlockSpec((H, H), lambda i: (0, 0)),
            ],
            out_specs=pl.BlockSpec((bt, N, N), lambda i: (i, 0, 0)),
        ),
        compiler_params=pltpu.CompilerParams(
            dimension_semantics=("parallel",)),
    )(mapper_t, hidden_bf, w_aug, w_bil_bf)


def reference_forward(mapper, hidden, w_lin, w_bil, root):
    """Pure-JAX mirror of the PyTorch forward (dropout = identity at eval) using
    the same bf16-operand / f32-accumulation scheme as the kernel, so the
    comparison tolerance can stay tight."""
    bf16, f32 = jnp.bfloat16, jnp.float32
    out = jnp.einsum('bca,bch->bah', mapper.astype(bf16), hidden.astype(bf16),
                     preferred_element_type=f32)
    out_bf = out.astype(bf16)
    final2 = jnp.einsum('bnh,hg->bng', out_bf, w_lin.astype(bf16),
                        preferred_element_type=f32)
    tmp = jnp.einsum('bnh,hg->bng', out_bf, w_bil.astype(bf16),
                     preferred_element_type=f32)
    final = jnp.einsum('bnh,bmh->bnm', tmp.astype(bf16), final2.astype(bf16),
                       preferred_element_type=f32)
    root_score = jnp.einsum('bnh,h->bn', out_bf, root.astype(bf16),
                            preferred_element_type=f32)
    final = final[:, 1:-1, 1:-1]
    N = final.shape[1]
    idx = jnp.arange(N)
    final = final.at[:, idx, idx].add(root_score[:, 1:-1])
    return final


if __name__ == "__main__":
    # Small shapes consistent with the module: H hidden, C wordpiece tokens,
    # A aligned word positions (output is (A-2) x (A-2)).
    B, C, A, H = 4, 16, 16, 32
    VOCAB = 100

    key = jax.random.PRNGKey(0)
    k_words, k_map, k_emb, k_lin, k_bil, k_root = jax.random.split(key, 6)

    # Synthetic deterministic "BERT": embedding lookup of token ids.
    words = jax.random.randint(k_words, (B, C), 0, VOCAB, dtype=jnp.int32)
    emb_table = jax.random.normal(k_emb, (VOCAB, H), dtype=jnp.float32) * 0.1
    hidden = emb_table[words]                                   # (B, C, H)

    # mapper: wordpiece -> word alignment matrix (0/1), cast to float as in forward.
    mapper = (jax.random.uniform(k_map, (B, C, A)) > 0.5).astype(jnp.float32)

    # Deterministic parameters (shapes from __init__: Linear(H,H), Linear(H,H), rand(H)).
    w_lin = jax.random.normal(k_lin, (H, H), dtype=jnp.float32) * 0.05
    w_bil = jax.random.normal(k_bil, (H, H), dtype=jnp.float32) * 0.05
    root = jax.random.uniform(k_root, (H,), dtype=jnp.float32)

    out = depcrf_forward(mapper, hidden, w_lin, w_bil, root)
    out = jax.block_until_ready(out)

    ref = reference_forward(mapper, hidden, w_lin, w_bil, root)
    assert out.shape == (B, A - 2, A - 2)
    assert jnp.allclose(out, ref, atol=1e-2, rtol=1e-2), "mismatch vs JAX reference"

    print("KERNEL_OK")
</pallas_src>

<mosaic_0001>
module attributes {stable_mosaic.version = 11 : i64} {
  func.func @depcrf_kernel(%arg0: i32, %arg1: memref<2x16x16xbf16, #tpu.memory_space<vmem>>, %arg2: memref<2x16x32xbf16, #tpu.memory_space<vmem>>, %arg3: memref<32x33xbf16, #tpu.memory_space<vmem>>, %arg4: memref<32x32xbf16, #tpu.memory_space<vmem>>, %arg5: memref<2x14x14xf32, #tpu.memory_space<vmem>>) attributes {dimension_semantics = [#tpu.dimension_semantics<parallel>], iteration_bounds = array<i64: 2>, scalar_prefetch = 0 : i64, scratch_operands = 0 : i64, tpu.core_type = #tpu.core_type<tc>, window_params = [{transform_indices = @transform_0, window_bounds = array<i64: 2, 16, 16>}, {transform_indices = @transform_1, window_bounds = array<i64: 2, 16, 32>}, {pipeline_mode = #tpu.pipeline_mode<synchronous>, transform_indices = @transform_2, window_bounds = array<i64: 32, 33>}, {pipeline_mode = #tpu.pipeline_mode<synchronous>, transform_indices = @transform_3, window_bounds = array<i64: 32, 32>}, {transform_indices = @transform_4, window_bounds = array<i64: 2, 14, 14>}]} {
    %c0 = arith.constant 0 : index
    %c0_0 = arith.constant 0 : index
    %0 = vector.load %arg3[%c0, %c0_0] : memref<32x33xbf16, #tpu.memory_space<vmem>>, vector<32x33xbf16>
    %c0_1 = arith.constant 0 : index
    %c0_2 = arith.constant 0 : index
    %1 = vector.load %arg4[%c0_1, %c0_2] : memref<32x32xbf16, #tpu.memory_space<vmem>>, vector<32x32xbf16>
    %c0_3 = arith.constant 0 : index
    %c0_4 = arith.constant 0 : index
    %c0_5 = arith.constant 0 : index
    %2 = vector.load %arg1[%c0_3, %c0_4, %c0_5] : memref<2x16x16xbf16, #tpu.memory_space<vmem>>, vector<1x16x16xbf16>
    %3 = vector.shape_cast %2 : vector<1x16x16xbf16> to vector<16x16xbf16>
    %c0_6 = arith.constant 0 : index
    %c0_7 = arith.constant 0 : index
    %c0_8 = arith.constant 0 : index
    %4 = vector.load %arg2[%c0_6, %c0_7, %c0_8] : memref<2x16x32xbf16, #tpu.memory_space<vmem>>, vector<1x16x32xbf16>
    %5 = vector.shape_cast %4 : vector<1x16x32xbf16> to vector<16x32xbf16>
    %cst = arith.constant dense<0.000000e+00> : vector<16x32xf32>
    %6 = tpu.matmul %3, %5, %cst {dimension_numbers = #tpu.dot_dimension_numbers<[1], [0], [0], [1], [0, 0, 1, 1], [], []>} : vector<16x16xbf16>, vector<16x32xbf16>, vector<16x32xf32> -> vector<16x32xf32>
    %7 = arith.truncf %6 : vector<16x32xf32> to vector<16x32xbf16>
    %c1 = arith.constant 1 : index
    %c0_9 = arith.constant 0 : index
    %c0_10 = arith.constant 0 : index
    %8 = vector.load %arg1[%c1, %c0_9, %c0_10] : memref<2x16x16xbf16, #tpu.memory_space<vmem>>, vector<1x16x16xbf16>
    %9 = vector.shape_cast %8 : vector<1x16x16xbf16> to vector<16x16xbf16>
    %c1_11 = arith.constant 1 : index
    %c0_12 = arith.constant 0 : index
    %c0_13 = arith.constant 0 : index
    %10 = vector.load %arg2[%c1_11, %c0_12, %c0_13] : memref<2x16x32xbf16, #tpu.memory_space<vmem>>, vector<1x16x32xbf16>
    %11 = vector.shape_cast %10 : vector<1x16x32xbf16> to vector<16x32xbf16>
    %cst_14 = arith.constant dense<0.000000e+00> : vector<16x32xf32>
    %12 = tpu.matmul %9, %11, %cst_14 {dimension_numbers = #tpu.dot_dimension_numbers<[1], [0], [0], [1], [0, 0, 1, 1], [], []>} : vector<16x16xbf16>, vector<16x32xbf16>, vector<16x32xf32> -> vector<16x32xf32>
    %13 = arith.truncf %12 : vector<16x32xf32> to vector<16x32xbf16>
    %14 = tpu.concatenate %7, %13 in 0 : vector<16x32xbf16>, vector<16x32xbf16> -> vector<32x32xbf16>
    %cst_15 = arith.constant dense<0.000000e+00> : vector<32x33xf32>
    %15 = tpu.matmul %14, %0, %cst_15 {dimension_numbers = #tpu.dot_dimension_numbers<[1], [0], [0], [1], [0, 0, 1, 1], [], []>} : vector<32x32xbf16>, vector<32x33xbf16>, vector<32x33xf32> -> vector<32x33xf32>
    %cst_16 = arith.constant dense<0.000000e+00> : vector<32x32xf32>
    %16 = tpu.matmul %14, %1, %cst_16 {dimension_numbers = #tpu.dot_dimension_numbers<[1], [0], [0], [1], [0, 0, 1, 1], [], []>} : vector<32x32xbf16>, vector<32x32xbf16>, vector<32x32xf32> -> vector<32x32xf32>
    %17 = tpu.iota {dimensions = array<i32: 0>} : vector<14x14xi32>
    %18 = tpu.iota {dimensions = array<i32: 1>} : vector<14x14xi32>
    %19 = arith.cmpi eq, %17, %18 : vector<14x14xi32>
    %20 = vector.extract_strided_slice %16 {offsets = [1, 0], sizes = [14, 32], strides = [1, 1]} : vector<32x32xf32> to vector<14x32xf32>
    %21 = arith.truncf %20 : vector<14x32xf32> to vector<14x32xbf16>
    %22 = vector.extract_strided_slice %15 {offsets = [1, 0], sizes = [14, 32], strides = [1, 1]} : vector<32x33xf32> to vector<14x32xf32>
    %23 = arith.truncf %22 : vector<14x32xf32> to vector<14x32xbf16>
    %24 = vector.extract_strided_slice %15 {offsets = [1, 32], sizes = [14, 1], strides = [1, 1]} : vector<32x33xf32> to vector<14x1xf32>
    %cst_17 = arith.constant dense<0.000000e+00> : vector<14x14xf32>
    %25 = tpu.matmul %21, %23, %cst_17 {dimension_numbers = #tpu.dot_dimension_numbers<[1], [1], [0], [0], [0, 0, 1, 0], [], []>} : vector<14x32xbf16>, vector<14x32xbf16>, vector<14x14xf32> -> vector<14x14xf32>
    %cst_18 = arith.constant 0.000000e+00 : f32
    %26 = vector.shape_cast %24 : vector<14x1xf32> to vector<14x1xf32>
    %27 = vector.broadcast %26 : vector<14x1xf32> to vector<14x14xf32>
    %28 = vector.broadcast %cst_18 : f32 to vector<14x14xf32>
    %29 = arith.select %19, %27, %28 : vector<14x14xi1>, vector<14x14xf32>
    %30 = arith.addf %25, %29 : vector<14x14xf32>
    %c0_19 = arith.constant 0 : index
    %c0_20 = arith.constant 0 : index
    %c0_21 = arith.constant 0 : index
    %31 = vector.load %arg5[%c0_19, %c0_20, %c0_21] : memref<2x14x14xf32, #tpu.memory_space<vmem>>, vector<1x14x14xf32>
    %32 = vector.shape_cast %31 : vector<1x14x14xf32> to vector<14x14xf32>
    %33 = vector.shape_cast %30 : vector<14x14xf32> to vector<1x14x14xf32>
    tpu.vector_store %arg5[%c0_19, %c0_20, %c0_21], %33 {strides = array<i32>} : memref<2x14x14xf32, #tpu.memory_space<vmem>>, vector<1x14x14xf32>,
    %34 = vector.extract_strided_slice %16 {offsets = [17, 0], sizes = [14, 32], strides = [1, 1]} : vector<32x32xf32> to vector<14x32xf32>
    %35 = arith.truncf %34 : vector<14x32xf32> to vector<14x32xbf16>
    %36 = vector.extract_strided_slice %15 {offsets = [17, 0], sizes = [14, 32], strides = [1, 1]} : vector<32x33xf32> to vector<14x32xf32>
    %37 = arith.truncf %36 : vector<14x32xf32> to vector<14x32xbf16>
    %38 = vector.extract_strided_slice %15 {offsets = [17, 32], sizes = [14, 1], strides = [1, 1]} : vector<32x33xf32> to vector<14x1xf32>
    %cst_22 = arith.constant dense<0.000000e+00> : vector<14x14xf32>
    %39 = tpu.matmul %35, %37, %cst_22 {dimension_numbers = #tpu.dot_dimension_numbers<[1], [1], [0], [0], [0, 0, 1, 0], [], []>} : vector<14x32xbf16>, vector<14x32xbf16>, vector<14x14xf32> -> vector<14x14xf32>
    %cst_23 = arith.constant 0.000000e+00 : f32
    %40 = vector.shape_cast %38 : vector<14x1xf32> to vector<14x1xf32>
    %41 = vector.broadcast %40 : vector<14x1xf32> to vector<14x14xf32>
    %42 = vector.broadcast %cst_23 : f32 to vector<14x14xf32>
    %43 = arith.select %19, %41, %42 : vector<14x14xi1>, vector<14x14xf32>
    %44 = arith.addf %39, %43 : vector<14x14xf32>
    %c1_24 = arith.constant 1 : index
    %c0_25 = arith.constant 0 : index
    %c0_26 = arith.constant 0 : index
    %45 = vector.load %arg5[%c1_24, %c0_25, %c0_26] : memref<2x14x14xf32, #tpu.memory_space<vmem>>, vector<1x14x14xf32>
    %46 = vector.shape_cast %45 : vector<1x14x14xf32> to vector<14x14xf32>
    %47 = vector.shape_cast %44 : vector<14x14xf32> to vector<1x14x14xf32>
    tpu.vector_store %arg5[%c1_24, %c0_25, %c0_26], %47 {strides = array<i32>} : memref<2x14x14xf32, #tpu.memory_space<vmem>>, vector<1x14x14xf32>,
    return
  }
  func.func @transform_0(%arg0: i32) -> (i32, i32, i32) {
    %c0_i32 = arith.constant 0 : i32
    %c0_i32_0 = arith.constant 0 : i32
    %c0_i32_1 = arith.constant 0 : i32
    return %arg0, %c0_i32, %c0_i32_0 : i32, i32, i32
  }
  func.func @transform_1(%arg0: i32) -> (i32, i32, i32) {
    %c0_i32 = arith.constant 0 : i32
    %c0_i32_0 = arith.constant 0 : i32
    %c0_i32_1 = arith.constant 0 : i32
    return %arg0, %c0_i32, %c0_i32_0 : i32, i32, i32
  }
  func.func @transform_2(%arg0: i32) -> (i32, i32) {
    %c0_i32 = arith.constant 0 : i32
    %c0_i32_0 = arith.constant 0 : i32
    %c0_i32_1 = arith.constant 0 : i32
    return %c0_i32, %c0_i32_0 : i32, i32
  }
  func.func @transform_3(%arg0: i32) -> (i32, i32) {
    %c0_i32 = arith.constant 0 : i32
    %c0_i32_0 = arith.constant 0 : i32
    %c0_i32_1 = arith.constant 0 : i32
    return %c0_i32, %c0_i32_0 : i32, i32
  }
  func.func @transform_4(%arg0: i32) -> (i32, i32, i32) {
    %c0_i32 = arith.constant 0 : i32
    %c0_i32_0 = arith.constant 0 : i32
    %c0_i32_1 = arith.constant 0 : i32
    return %arg0, %c0_i32, %c0_i32_0 : i32, i32, i32
  }
}

</mosaic_0001>

<llo_original>
// kernel: tpu_custom_call.1
$region0: #{tpu_custom_call.1}
  #allocation0 [shape = 'u32[]', space=smem, size = 0x4, offset = 0x4, fixed_abs, tag = 'smem constant byte address 0x4 - core index']
  #allocation1 [shape = 'u32[144,128]{1,0:T(1,128)}', space=vmem, size = 0x12000, scoped, tag = 'internal scratch']
  %s0 = inlined_call_operand.hbm [shape: bf16[4,16,16], index: 0, kind: input, shape index: {}]
  %s1 = inlined_call_operand.hbm [shape: bf16[4,16,32], index: 1, kind: input, shape index: {}]
  %s2 = inlined_call_operand.hbm [shape: bf16[32,33], index: 2, kind: input, shape index: {}]
  %s3 = inlined_call_operand.hbm [shape: bf16[32,32], index: 3, kind: input, shape index: {}]
  %s4 = inlined_call_operand.vmem [shape: f32[4,14,14], index: 4, kind: output, shape index: {}]
  %s5 = sld [smem:[#allocation0]]
  $region65: #{tpu_custom_call.1} parent=0
    _
  %s7 = ssub.s32 1, %s5
  %s8 = scalar_select 0, %s7, %s5
  $region1: #{tpu_custom_call.1} parent=0
    #allocation2 [shape = 'u8[16384]{0}', space=vmem, size = 0x4000, scoped, tag = 'input window, operand 0']
    #allocation3 [shape = 's32[2]{0}', space=sflag, size = 0x8, scoped, tag = 'scoped memory for tpu_custom_call.1']
    #allocation4 [shape = 'u8[16384]{0}', space=vmem, size = 0x4000, scoped, tag = 'input window, operand 1']
    #allocation5 [shape = 's32[2]{0}', space=sflag, size = 0x8, scoped, tag = 'scoped memory for tpu_custom_call.1']
    #allocation6 [shape = 'u8[8192]{0}', space=vmem, size = 0x2000, scoped, tag = 'input window, operand 2, single buffered']
    #allocation7 [shape = 'u8[8192]{0}', space=vmem, size = 0x2000, scoped, tag = 'input window, operand 3, single buffered']
    #allocation8 [shape = 's32[1]{0}', space=sflag, size = 0x4, scoped, tag = 'scoped memory for tpu_custom_call.1']
    %9 = vsyncpa [#allocation3], 0
    %s10 = scalar_lea.sflag [#allocation3], 1
    %11 = vsyncpa %s10, 0
    %12 = vsyncpa [#allocation5], 0
    %s13 = scalar_lea.sflag [#allocation5], 1
    %14 = vsyncpa %s13, 0
    %15 = vsyncpa [#allocation8], 0
    loop: start=0, step=1, limit=4
    $region2: #{tpu_custom_call.1} parent=1 // loop_pre_header
      _
    $region3: #{tpu_custom_call.1} parent=1 // loop_header
      %s17 = sphi 0, %s21
      %p18 = scmp.ge.s32.totalorder %s17, 4
      %s27 = sphi 0, %s29
      %s30 = sphi 0, %s27
      %s31 = sphi 0, %s30
      %s47 = sphi 0, %s31
      %s53 = sphi 0, %s55
      %s56 = sphi 0, %s53
      %s57 = sphi 0, %s56
      %s73 = sphi 0, %s57
      %s77 = sphi 0, %s77
      %s79 = sphi 0, %s77
      %s80 = sphi 0, %s79
      %s94 = sphi 0, %s80
      %s98 = sphi 0, %s98
      %s100 = sphi 0, %s98
      %s101 = sphi 0, %s100
      %s115 = sphi 0, %s101
      %s121 = sphi 0, %s123
      %s124 = sphi 0, %s121
      %s125 = sphi 0, %s124
      %s141 = sphi 0, %s125
    $region4: #{tpu_custom_call.1} parent=1 // loop_header_branch
      %20 = sbr.rel (%p18) target = $region8
    $region5: #{tpu_custom_call.1} parent=1 // loop_body
      %s22 = ssub.s32 %s17, 1
      %s23 = ssub.s32 %s17, 2
      %s24 = sadd.s32 %s17, 1
      %s25 = ssub.s32 %s17, %s24
      %p26 = scmp.eq.s32.totalorder %s25, 0
      %s28 = sadd.s32 %s27, 1
      %s29 = scalar_select %p26, %s27, %s28
      %p32 = pneg %p26
      %p33 = scmp.eq.s32.totalorder %s17, 1
      %p34 = por %p32, %p33
      %p35 = scmp.ne.s32.totalorder %s27, %s30
      %p36 = scmp.eq.s32.totalorder %s17, 0
      %p37 = por %p35, %p36
      %p38 = scmp.ne.s32.totalorder %s27, %s30
      %p39 = scmp.eq.s32.totalorder %s22, 1
      %p40 = por %p38, %p39
      %p41 = scmp.ne.s32.totalorder %s30, %s31
      %p42 = scmp.eq.s32.totalorder %s22, 0
      %p43 = por %p41, %p42
      %p44 = scmp.ne.s32.totalorder %s30, %s31
      %p45 = scmp.eq.s32.totalorder %s23, 1
      %p46 = por %p44, %p45
      %p48 = scmp.ne.s32.totalorder %s31, %s47
      %p49 = scmp.eq.s32.totalorder %s23, 0
      %p50 = por %p48, %p49
      %s51 = ssub.s32 %s17, %s24
      %p52 = scmp.eq.s32.totalorder %s51, 0
      %s54 = sadd.s32 %s53, 1
      %s55 = scalar_select %p52, %s53, %s54
      %p58 = pneg %p52
      %p59 = scmp.eq.s32.totalorder %s17, 1
      %p60 = por %p58, %p59
      %p61 = scmp.ne.s32.totalorder %s53, %s56
      %p62 = scmp.eq.s32.totalorder %s17, 0
      %p63 = por %p61, %p62
      %p64 = scmp.ne.s32.totalorder %s53, %s56
      %p65 = scmp.eq.s32.totalorder %s22, 1
      %p66 = por %p64, %p65
      %p67 = scmp.ne.s32.totalorder %s56, %s57
      %p68 = scmp.eq.s32.totalorder %s22, 0
      %p69 = por %p67, %p68
      %p70 = scmp.ne.s32.totalorder %s56, %s57
      %p71 = scmp.eq.s32.totalorder %s23, 1
      %p72 = por %p70, %p71
      %p74 = scmp.ne.s32.totalorder %s57, %s73
      %p75 = scmp.eq.s32.totalorder %s23, 0
      %p76 = por %p74, %p75
      %s78 = sadd.s32 %s77, 1
      %p81 = scmp.eq.s32.totalorder %s17, 1
      %p82 = scmp.ne.s32.totalorder %s77, %s79
      %p83 = scmp.eq.s32.totalorder %s17, 0
      %p84 = por %p82, %p83
      %p85 = scmp.ne.s32.totalorder %s77, %s79
      %p86 = scmp.eq.s32.totalorder %s22, 1
      %p87 = por %p85, %p86
      %p88 = scmp.ne.s32.totalorder %s79, %s80
      %p89 = scmp.eq.s32.totalorder %s22, 0
      %p90 = por %p88, %p89
      %p91 = scmp.ne.s32.totalorder %s79, %s80
      %p92 = scmp.eq.s32.totalorder %s23, 1
      %p93 = por %p91, %p92
      %p95 = scmp.ne.s32.totalorder %s80, %s94
      %p96 = scmp.eq.s32.totalorder %s23, 0
      %p97 = por %p95, %p96
      %s99 = sadd.s32 %s98, 1
      %p102 = scmp.eq.s32.totalorder %s17, 1
      %p103 = scmp.ne.s32.totalorder %s98, %s100
      %p104 = scmp.eq.s32.totalorder %s17, 0
      %p105 = por %p103, %p104
      %p106 = scmp.ne.s32.totalorder %s98, %s100
      %p107 = scmp.eq.s32.totalorder %s22, 1
      %p108 = por %p106, %p107
      %p109 = scmp.ne.s32.totalorder %s100, %s101
      %p110 = scmp.eq.s32.totalorder %s22, 0
      %p111 = por %p109, %p110
      %p112 = scmp.ne.s32.totalorder %s100, %s101
      %p113 = scmp.eq.s32.totalorder %s23, 1
      %p114 = por %p112, %p113
      %p116 = scmp.ne.s32.totalorder %s101, %s115
      %p117 = scmp.eq.s32.totalorder %s23, 0
      %p118 = por %p116, %p117
      %s119 = ssub.s32 %s17, %s24
      %p120 = scmp.eq.s32.totalorder %s119, 0
      %s122 = sadd.s32 %s121, 1
      %s123 = scalar_select %p120, %s121, %s122
      %p126 = pneg %p120
      %p127 = scmp.eq.s32.totalorder %s17, 1
      %p128 = por %p126, %p127
      %p129 = scmp.ne.s32.totalorder %s121, %s124
      %p130 = scmp.eq.s32.totalorder %s17, 0
      %p131 = por %p129, %p130
      %p132 = scmp.ne.s32.totalorder %s121, %s124
      %p133 = scmp.eq.s32.totalorder %s22, 1
      %p134 = por %p132, %p133
      %p135 = scmp.ne.s32.totalorder %s124, %s125
      %p136 = scmp.eq.s32.totalorder %s22, 0
      %p137 = por %p135, %p136
      %p138 = scmp.ne.s32.totalorder %s124, %s125
      %p139 = scmp.eq.s32.totalorder %s23, 1
      %p140 = por %p138, %p139
      %p142 = scmp.ne.s32.totalorder %s125, %s141
      %p143 = scmp.eq.s32.totalorder %s23, 0
      %p144 = por %p142, %p143
      %p145 = scmp.le.s32.totalorder 1, %s17
      %p146 = scmp.lt.s32.totalorder %s17, 3
      %p147 = pnand %p145, %p146
      %p148 = pneg %p147
      // Predicated region
      $region9: #{tpu_custom_call.1} parent=5 // pred_check
        _
      $region10: #{tpu_custom_call.1} parent=5 // pred_check_branch
        %150 = sbr.rel (%p147) target = $region12
      $region11: #{tpu_custom_call.1} parent=5 // pred_region
        %s151 = ssub.s32 %s17, 1
        // Predicated region
        $region13: #{tpu_custom_call.1} parent=11 // pred_check
          %p152 = pneg %p90
        $region14: #{tpu_custom_call.1} parent=11 // pred_check_branch
          %154 = sbr.rel (%p152) target = $region16
        $region15: #{tpu_custom_call.1} parent=11 // pred_region
          %s156 = ssub.s32 256, 256
          %157 = vsyncadd [#allocation5], %s156
          %s158 = sshll.u32 [#allocation6], 4
          %s159 = int_to_ptr.vmem [resolvable:$true] %s158
          %164 = dma.hbm_to_vmem [thread:$0]  %s2, 256, %s159, [#allocation5], 64, 64, 4
        $region16: #{tpu_custom_call.1} parent=11 // pred_fallthru
          _
        // Predicated region
        $region17: #{tpu_custom_call.1} parent=11 // pred_check
          %p165 = pneg %p111
        $region18: #{tpu_custom_call.1} parent=11 // pred_check_branch
          %167 = sbr.rel (%p165) target = $region20
        $region19: #{tpu_custom_call.1} parent=11 // pred_region
          %s169 = ssub.s32 256, 256
          %170 = vsyncadd [#allocation8], %s169
          %s171 = sshll.u32 [#allocation7], 4
          %s172 = int_to_ptr.vmem [resolvable:$true] %s171
          %177 = dma.hbm_to_vmem [thread:$0]  %s3, 256, %s172, [#allocation8], 64, 64, 4
        $region20: #{tpu_custom_call.1} parent=11 // pred_fallthru
          _
      $region12: #{tpu_custom_call.1} parent=5 // pred_fallthru
        _
      %p178 = scmp.lt.s32.totalorder %s17, 2
      // Predicated region
      $region21: #{tpu_custom_call.1} parent=5 // pred_check
        %p179 = pneg %p178
      $region22: #{tpu_custom_call.1} parent=5 // pred_check_branch
        %181 = sbr.rel (%p179) target = $region24
      $region23: #{tpu_custom_call.1} parent=5 // pred_region
        // Predicated region
        $region25: #{tpu_custom_call.1} parent=23 // pred_check
          %p182 = pneg %p37
        $region26: #{tpu_custom_call.1} parent=23 // pred_check_branch
          %184 = sbr.rel (%p182) target = $region28
        $region27: #{tpu_custom_call.1} parent=23 // pred_region
          %s185 = sand.u32 %s27, 1
          %s186 = scalar_lea.sflag [#allocation3], %s185
          %s187 = sand.u32 %s27, 1
          %s188 = smul.addr %s187, 16
          %s189 = scalar_lea.vmem [#allocation2], %s188
          %s190 = smul.u32 2, %s17
          %s192 = ssub.s32 256, 256
          %193 = vsyncadd %s186, %s192
          %s194 = smul.addr %s190, 2
          %s195 = smul.addr %s194, 64
          %s196 = scalar_lea.hbm %s0, %s195
          %s197 = sshll.u32 %s189, 4
          %s198 = int_to_ptr.vmem [resolvable:$true] %s197
          %203 = dma.hbm_to_vmem [thread:$0]  %s196, 256, %s198, %s186, 64, 64, 4
        $region28: #{tpu_custom_call.1} parent=23 // pred_fallthru
          _
        // Predicated region
        $region29: #{tpu_custom_call.1} parent=23 // pred_check
          %p204 = pneg %p63
        $region30: #{tpu_custom_call.1} parent=23 // pred_check_branch
          %206 = sbr.rel (%p204) target = $region32
        $region31: #{tpu_custom_call.1} parent=23 // pred_region
          %s207 = sand.u32 %s17, 1
          %s208 = scalar_lea.sflag [#allocation5], %s207
          %s209 = sand.u32 %s53, 1
          %s210 = smul.addr %s209, 16
          %s211 = scalar_lea.vmem [#allocation4], %s210
          %s212 = smul.u32 2, %s17
          %s214 = ssub.s32 256, 256
          %215 = vsyncadd %s208, %s214
          %s216 = smul.addr %s212, 2
          %s217 = smul.addr %s216, 64
          %s218 = scalar_lea.hbm %s1, %s217
          %s219 = sshll.u32 %s211, 4
          %s220 = int_to_ptr.vmem [resolvable:$true] %s219
          %225 = dma.hbm_to_vmem [thread:$0]  %s218, 256, %s220, %s208, 64, 64, 4
        $region32: #{tpu_custom_call.1} parent=23 // pred_fallthru
          _
      $region24: #{tpu_custom_call.1} parent=5 // pred_fallthru
        _
      %p226 = scmp.le.s32.totalorder 1, %s17
      %p227 = scmp.lt.s32.totalorder %s17, 3
      %p228 = pnand %p226, %p227
      %p229 = pneg %p228
      // Predicated region
      $region33: #{tpu_custom_call.1} parent=5 // pred_check
        _
      $region34: #{tpu_custom_call.1} parent=5 // pred_check_branch
        %231 = sbr.rel (%p228) target = $region36
      $region35: #{tpu_custom_call.1} parent=5 // pred_region
        %s232 = ssub.s32 %s17, 1
        %s233 = sand.u32 %s30, 1
        %s234 = scalar_lea.sflag [#allocation3], %s233
        %s235 = sand.u32 %s30, 1
        %s236 = smul.addr %s235, 16
        %s237 = scalar_lea.vmem [#allocation2], %s236
        // Predicated region
        $region37: #{tpu_custom_call.1} parent=35 // pred_check
          %p238 = pneg %p43
        $region38: #{tpu_custom_call.1} parent=35 // pred_check_branch
          %240 = sbr.rel (%p238) target = $region40
        $region39: #{tpu_custom_call.1} parent=35 // pred_region
          %241 = dma.done %s234, 256
        $region40: #{tpu_custom_call.1} parent=35 // pred_fallthru
          _
        %s242 = sand.u32 %s22, 1
        %s243 = scalar_lea.sflag [#allocation5], %s242
        %s244 = sand.u32 %s56, 1
        %s245 = smul.addr %s244, 16
        %s246 = scalar_lea.vmem [#allocation4], %s245
        // Predicated region
        $region41: #{tpu_custom_call.1} parent=35 // pred_check
          %p247 = pneg %p69
        $region42: #{tpu_custom_call.1} parent=35 // pred_check_branch
          %249 = sbr.rel (%p247) target = $region44
        $region43: #{tpu_custom_call.1} parent=35 // pred_region
          %250 = dma.done %s243, 256
        $region44: #{tpu_custom_call.1} parent=35 // pred_fallthru
          _
        // Predicated region
        $region45: #{tpu_custom_call.1} parent=35 // pred_check
          %p251 = pneg %p90
        $region46: #{tpu_custom_call.1} parent=35 // pred_check_branch
          %253 = sbr.rel (%p251) target = $region48
        $region47: #{tpu_custom_call.1} parent=35 // pred_region
          %254 = dma.done [#allocation5], 256
        $region48: #{tpu_custom_call.1} parent=35 // pred_fallthru
          _
        // Predicated region
        $region49: #{tpu_custom_call.1} parent=35 // pred_check
          %p255 = pneg %p111
        $region50: #{tpu_custom_call.1} parent=35 // pred_check_branch
          %257 = sbr.rel (%p255) target = $region52
        $region51: #{tpu_custom_call.1} parent=35 // pred_region
          %258 = dma.done [#allocation8], 256
        $region52: #{tpu_custom_call.1} parent=35 // pred_fallthru
          _
        %s259 = sand.u32 %s30, 1
        %s260 = scalar_lea.sflag [#allocation3], %s259
        %s261 = sand.u32 %s30, 1
        %s262 = smul.addr %s261, 16
        %s263 = scalar_lea.vmem [#allocation2], %s262
        %p264 = pneg %p43
        %p265 = pneg %p40
        %s266 = sand.u32 %s22, 1
        %s267 = scalar_lea.sflag [#allocation5], %s266
        %s268 = sand.u32 %s56, 1
        %s269 = smul.addr %s268, 16
        %s270 = scalar_lea.vmem [#allocation4], %s269
        %p271 = pneg %p69
        %p272 = pneg %p66
        %p273 = pneg %p90
        %p274 = pneg %p87
        %p275 = pneg %p111
        %p276 = pneg %p108
        %p277 = pneg %p137
        %p278 = pneg %p134
        %s279 = smul.u32 2, %s22
        %p280 = scmp.lt.s32.totalorder %s279, 3
        %s281 = scalar_select %p280, %s279, 3
        %s282 = smul.addr %s281, 2
        %s283 = smul.addr %s282, 8
        %s284 = scalar_lea.vmem %s4, %s283
        %s285 = smul.u32 2, %s22
        %s286 = smul.u32 2, %s22
        %s287 = smul.u32 2, %s22
        %p288 = scmp.lt.s32.totalorder %s287, 3
        %s289 = scalar_select %p288, %s287, 3
        %s290 = smul.addr %s289, 2
        %s291 = smul.addr %s290, 8
        %s292 = scalar_lea.vmem %s4, %s291
        %s293 = smul.u32 2, %s22
        %v295 = vld [vmem:[#allocation6] sm:$0xf]
        %v296 = vld [vmem:[#allocation6 + $0x4] sm:$0xf]
        %v297 = vld [vmem:[#allocation6 + $0x8] sm:$0xf]
        %v298 = vld [vmem:[#allocation6 + $0xc] sm:$0xf]
        %v299 = vld [vmem:[#allocation7] sm:$0xf]
        %v300 = vld [vmem:[#allocation7 + $0x4] sm:$0xf]
        %v301 = vld [vmem:[#allocation7 + $0x8] sm:$0xf]
        %v302 = vld [vmem:[#allocation7 + $0xc] sm:$0xf]
        %v303 = vld [vmem:[%s237] sm:$0xf]
        %v304 = vld [vmem:[%s237 + $0x4] sm:$0xf]
        %v305 = vld [vmem:[%s246] sm:$0xf]
        %v306 = vld [vmem:[%s246 + $0x4] sm:$0xf]
        %v309 = vunpack.c.l.b16 %v303
        %v310 = vunpack.c.l.b16 %v304
        %v311 = vpack.c.b16 %v310, %v309
        %v314 = vunpack.c.l.b16 %v305
        %v315 = vunpack.c.l.b16 %v306
        %v316 = vpack.c.b16 %v315, %v314
        %vm318 = vcmask 130048
        %v320 = vsel %vm318, %v311, 0
        %322 = vmatprep.subr.bf16.mxu0 0
        %323 = vmatpush1.bf16.msra.mxu0 0
        %324 = vmatprep.subr.bf16.mxu0 0
        %325 = vmatpush1.bf16.msra.mxu0 0
        %326 = vmatprep.subr.bf16.mxu0 0
        %327 = vmatpush1.bf16.msra.mxu0 0
        %328 = vmatprep.subr.bf16.mxu0 0
        %329 = vmatpush1.bf16.msra.mxu0 0
        %330 = vmatprep.subr.bf16.mxu0 0
        %331 = vmatpush1.bf16.msra.mxu0 0
        %332 = vmatprep.subr.bf16.mxu0 0
        %333 = vmatpush1.bf16.msra.mxu0 0
        %334 = vmatprep.subr.bf16.mxu0 0
        %335 = vmatpush1.bf16.msra.mxu0 0
        %336 = vmatprep.subr.bf16.mxu0 0
        %337 = vmatpush1.bf16.msra.mxu0 %v316
        %338 = vmatprep.subr.bf16.mxu0 0
        %339 = vmatpush2.bf16.msra.mxu0 0
        %340 = vmatprep.subr.bf16.mxu0 0
        %341 = vmatpush2.bf16.msra.mxu0 0
        %342 = vmatprep.subr.bf16.mxu0 0
        %343 = vmatpush2.bf16.msra.mxu0 0
        %344 = vmatprep.subr.bf16.mxu0 0
        %345 = vmatpush2.bf16.msra.mxu0 0
        %346 = vmatprep.subr.bf16.mxu0 0
        %347 = vmatpush2.bf16.msra.mxu0 0
        %348 = vmatprep.subr.bf16.mxu0 0
        %349 = vmatpush2.bf16.msra.mxu0 0
        %350 = vmatprep.subr.bf16.mxu0 0
        %351 = vmatpush2.bf16.msra.mxu0 0
        %352 = vmatprep.subr.bf16.mxu0 0
        %353 = vmatpush2.bf16.msra.mxu0 0
        %354 = vmatprep.mubr.bf16.mxu0 0
        %355 = vmatmul.mubr.bf16.gmra.mxu0 %v320
        %v356 = vpop.f32.mrf.mxu0
        %v357 = vadd.f32 0.0, %v356
        %v358 = vpop.f32.mrf.mxu0
        %v359 = vpop.f32.mrf.mxu0
        %v360 = vadd.f32 0.0, %v359
        %v361 = vpop.f32.mrf.mxu0
        %362 = vdwg.mxu0
        %v363 = vpack.c.bf16 %v360, %v357
        %s364 = scalar_lea.vmem %s237, 8 [#allocation2]
        %v365 = vld [vmem:[%s364] sm:$0xf]
        %v366 = vld [vmem:[%s364 + $0x4] sm:$0xf]
        %s367 = scalar_lea.vmem %s246, 8 [#allocation4]
        %v368 = vld [vmem:[%s367] sm:$0xf]
        %v369 = vld [vmem:[%s367 + $0x4] sm:$0xf]
        %v372 = vunpack.c.l.b16 %v365
        %v373 = vunpack.c.l.b16 %v366
        %v374 = vpack.c.b16 %v373, %v372
        %v377 = vunpack.c.l.b16 %v368
        %v378 = vunpack.c.l.b16 %v369
        %v379 = vpack.c.b16 %v378, %v377
        %v382 = vsel %vm318, %v374, 0
        %384 = vmatprep.subr.bf16.mxu0 0
        %385 = vmatpush1.bf16.msra.mxu0 0
        %386 = vmatprep.subr.bf16.mxu0 0
        %387 = vmatpush1.bf16.msra.mxu0 0
        %388 = vmatprep.subr.bf16.mxu0 0
        %389 = vmatpush1.bf16.msra.mxu0 0
        %390 = vmatprep.subr.bf16.mxu0 0
        %391 = vmatpush1.bf16.msra.mxu0 0
        %392 = vmatprep.subr.bf16.mxu0 0
        %393 = vmatpush1.bf16.msra.mxu0 0
        %394 = vmatprep.subr.bf16.mxu0 0
        %395 = vmatpush1.bf16.msra.mxu0 0
        %396 = vmatprep.subr.bf16.mxu0 0
        %397 = vmatpush1.bf16.msra.mxu0 0
        %398 = vmatprep.subr.bf16.mxu0 0
        %399 = vmatpush1.bf16.msra.mxu0 %v379
        %400 = vmatprep.subr.bf16.mxu0 0
        %401 = vmatpush2.bf16.msra.mxu0 0
        %402 = vmatprep.subr.bf16.mxu0 0
        %403 = vmatpush2.bf16.msra.mxu0 0
        %404 = vmatprep.subr.bf16.mxu0 0
        %405 = vmatpush2.bf16.msra.mxu0 0
        %406 = vmatprep.subr.bf16.mxu0 0
        %407 = vmatpush2.bf16.msra.mxu0 0
        %408 = vmatprep.subr.bf16.mxu0 0
        %409 = vmatpush2.bf16.msra.mxu0 0
        %410 = vmatprep.subr.bf16.mxu0 0
        %411 = vmatpush2.bf16.msra.mxu0 0
        %412 = vmatprep.subr.bf16.mxu0 0
        %413 = vmatpush2.bf16.msra.mxu0 0
        %414 = vmatprep.subr.bf16.mxu0 0
        %415 = vmatpush2.bf16.msra.mxu0 0
        %416 = vmatprep.mubr.bf16.mxu0 0
        %417 = vmatmul.mubr.bf16.gmra.mxu0 %v382
        %v418 = vpop.f32.mrf.mxu0
        %v419 = vadd.f32 0.0, %v418
        %v420 = vpop.f32.mrf.mxu0
        %v421 = vpop.f32.mrf.mxu0
        %v422 = vadd.f32 0.0, %v421
        %v423 = vpop.f32.mrf.mxu0
        %424 = vdwg.mxu0
        %v425 = vpack.c.bf16 %v422, %v419
        %v430 = vunpack.c.l.b16 %v295
        %v431 = vunpack.c.l.b16 %v296
        %v432 = vunpack.c.l.b16 %v297
        %v433 = vunpack.c.l.b16 %v298
        %v434 = vpack.c.b16 %v431, %v430
        %v435 = vpack.c.b16 %v433, %v432
        %vm438 = vcmask 261120
        %v440 = vsel %vm438, %v363, 0
        %v443 = vsel %vm438, %v425, 0
        %445 = vmatprep.subr.bf16.mxu0 0
        %446 = vmatpush1.bf16.msra.mxu0 0
        %447 = vmatprep.subr.bf16.mxu0 0
        %448 = vmatpush1.bf16.msra.mxu0 0
        %449 = vmatprep.subr.bf16.mxu0 0
        %450 = vmatpush1.bf16.msra.mxu0 0
        %451 = vmatprep.subr.bf16.mxu0 0
        %452 = vmatpush1.bf16.msra.mxu0 0
        %453 = vmatprep.subr.bf16.mxu0 0
        %454 = vmatpush1.bf16.msra.mxu0 0
        %455 = vmatprep.subr.bf16.mxu0 0
        %456 = vmatpush1.bf16.msra.mxu0 0
        %457 = vmatprep.subr.bf16.mxu0 0
        %458 = vmatpush1.bf16.msra.mxu0 %v435
        %459 = vmatprep.subr.bf16.mxu0 0
        %460 = vmatpush1.bf16.msra.mxu0 %v434
        %461 = vmatprep.subr.bf16.mxu0 0
        %462 = vmatpush2.bf16.msra.mxu0 0
        %463 = vmatprep.subr.bf16.mxu0 0
        %464 = vmatpush2.bf16.msra.mxu0 0
        %465 = vmatprep.subr.bf16.mxu0 0
        %466 = vmatpush2.bf16.msra.mxu0 0
        %467 = vmatprep.subr.bf16.mxu0 0
        %468 = vmatpush2.bf16.msra.mxu0 0
        %469 = vmatprep.subr.bf16.mxu0 0
        %470 = vmatpush2.bf16.msra.mxu0 0
        %471 = vmatprep.subr.bf16.mxu0 0
        %472 = vmatpush2.bf16.msra.mxu0 0
        %473 = vmatprep.subr.bf16.mxu0 0
        %474 = vmatpush2.bf16.msra.mxu0 0
        %475 = vmatprep.subr.bf16.mxu0 0
        %476 = vmatpush2.bf16.msra.mxu0 0
        %477 = vmatprep.mubr.bf16.mxu0 0
        %478 = vmatmul.mubr.bf16.gmra.mxu0 %v440
        %v479 = vpop.f32.mrf.mxu0
        %v480 = vadd.f32 0.0, %v479
        %v481 = vpop.f32.mrf.mxu0
        %v482 = vpop.f32.mrf.mxu0
        %v483 = vadd.f32 0.0, %v482
        %v484 = vpop.f32.mrf.mxu0
        %485 = vmatprep.mubr.bf16.mxu0 0
        %486 = vmatmul.mubr.bf16.gmra.mxu0 %v443
        %v487 = vpop.f32.mrf.mxu0
        %v488 = vadd.f32 0.0, %v487
        %v489 = vpop.f32.mrf.mxu0
        %v490 = vpop.f32.mrf.mxu0
        %v491 = vadd.f32 0.0, %v490
        %v492 = vpop.f32.mrf.mxu0
        %493 = vdwg.mxu0
        %v498 = vunpack.c.l.b16 %v299
        %v499 = vunpack.c.l.b16 %v300
        %v500 = vunpack.c.l.b16 %v301
        %v501 = vunpack.c.l.b16 %v302
        %v502 = vpack.c.b16 %v499, %v498
        %v503 = vpack.c.b16 %v501, %v500
        %506 = vmatprep.subr.bf16.mxu0 0
        %507 = vmatpush1.bf16.msra.mxu0 0
        %508 = vmatprep.subr.bf16.mxu0 0
        %509 = vmatpush1.bf16.msra.mxu0 0
        %510 = vmatprep.subr.bf16.mxu0 0
        %511 = vmatpush1.bf16.msra.mxu0 0
        %512 = vmatprep.subr.bf16.mxu0 0
        %513 = vmatpush1.bf16.msra.mxu0 0
        %514 = vmatprep.subr.bf16.mxu0 0
        %515 = vmatpush1.bf16.msra.mxu0 0
        %516 = vmatprep.subr.bf16.mxu0 0
        %517 = vmatpush1.bf16.msra.mxu0 0
        %518 = vmatprep.subr.bf16.mxu0 0
        %519 = vmatpush1.bf16.msra.mxu0 %v503
        %520 = vmatprep.subr.bf16.mxu0 0
        %521 = vmatpush1.bf16.msra.mxu0 %v502
        %522 = vmatprep.subr.bf16.mxu0 0
        %523 = vmatpush2.bf16.msra.mxu0 0
        %524 = vmatprep.subr.bf16.mxu0 0
        %525 = vmatpush2.bf16.msra.mxu0 0
        %526 = vmatprep.subr.bf16.mxu0 0
        %527 = vmatpush2.bf16.msra.mxu0 0
        %528 = vmatprep.subr.bf16.mxu0 0
        %529 = vmatpush2.bf16.msra.mxu0 0
        %530 = vmatprep.subr.bf16.mxu0 0
        %531 = vmatpush2.bf16.msra.mxu0 0
        %532 = vmatprep.subr.bf16.mxu0 0
        %533 = vmatpush2.bf16.msra.mxu0 0
        %534 = vmatprep.subr.bf16.mxu0 0
        %535 = vmatpush2.bf16.msra.mxu0 0
        %536 = vmatprep.subr.bf16.mxu0 0
        %537 = vmatpush2.bf16.msra.mxu0 0
        %538 = vmatprep.mubr.bf16.mxu0 0
        %539 = vmatmul.mubr.bf16.gmra.mxu0 %v440
        %v540 = vpop.f32.mrf.mxu0
        %v541 = vadd.f32 0.0, %v540
        %v542 = vpop.f32.mrf.mxu0
        %v543 = vpop.f32.mrf.mxu0
        %v544 = vadd.f32 0.0, %v543
        %v545 = vpop.f32.mrf.mxu0
        %546 = vmatprep.mubr.bf16.mxu0 0
        %547 = vmatmul.mubr.bf16.gmra.mxu0 %v443
        %v548 = vpop.f32.mrf.mxu0
        %v549 = vadd.f32 0.0, %v548
        %v550 = vpop.f32.mrf.mxu0
        %v551 = vpop.f32.mrf.mxu0
        %v552 = vadd.f32 0.0, %v551
        %v553 = vpop.f32.mrf.mxu0
        %554 = vdwg.mxu0
        %v555 = vlaneseq
        %v556 = vshrl.u32 %v555, 7
        %v557 = vadd.s32 %v556, 8
        %v558 = vlaneseq
        %v559 = vand.u32 %v558, 127
        %vm560 = vcmp.eq.s32.totalorder %v556, %v559
        %vm561 = vcmp.eq.s32.totalorder %v557, %v559
        %v562 = vpack.c.bf16 %v544, %v541
        %v563 = vpack.c.bf16 %v483, %v480
        %565 = vset.pattern.permute.xlu0 32
        %566 = vperm.xlu0 %565, %v480
        %v567 = vpop.permute.xlu0 %566
        %569 = vset.pattern.permute.xlu0 32
        %570 = vperm.xlu0 %569, %v483
        %v571 = vpop.permute.xlu0 %570
        %vm572 = vcmask 1046528
        %v573 = vrot.slane %v567, 1
        %v574 = vrot.slane %v571, 1
        %v575 = vsel %vm572, %v573, %v574
        %v578 = vsel %vm560, %v575, 0.0
        %v579 = vsel %vm561, %v574, 0.0
        %v581 = vshrl.u32 %v562, 16
        %v583 = vshll.u32 %v562, 16
        %v585 = vrot.slane %v583, 1
        %v586 = vor.u32 %v581, %v585
        %v588 = vshrl.u32 %v563, 16
        %v590 = vshll.u32 %v563, 16
        %v592 = vrot.slane %v590, 1
        %v593 = vor.u32 %v588, %v592
        %v595 = vsel %vm438, %v586, 0
        %v598 = vsel %vm438, %v593, 0
        %600 = vmatprep.subr.bf16.mxu0 0
        %601 = vmatpush1.bf16.xpose.msra.mxu0 0
        %602 = vmatprep.subr.bf16.mxu0 0
        %603 = vmatpush1.bf16.xpose.msra.mxu0 0
        %604 = vmatprep.subr.bf16.mxu0 0
        %605 = vmatpush1.bf16.xpose.msra.mxu0 0
        %606 = vmatprep.subr.bf16.mxu0 0
        %607 = vmatpush1.bf16.xpose.msra.mxu0 0
        %608 = vmatprep.subr.bf16.mxu0 0
        %609 = vmatpush1.bf16.xpose.msra.mxu0 0
        %610 = vmatprep.subr.bf16.mxu0 0
        %611 = vmatpush1.bf16.xpose.msra.mxu0 0
        %612 = vmatprep.subr.bf16.mxu0 0
        %613 = vmatpush1.bf16.xpose.msra.mxu0 0
        %614 = vmatprep.subr.bf16.mxu0 0
        %615 = vmatpush1.bf16.xpose.msra.mxu0 %v598
        %616 = vmatprep.subr.bf16.mxu0 0
        %617 = vmatpush2.bf16.xpose.msra.mxu0 0
        %618 = vmatprep.subr.bf16.mxu0 0
        %619 = vmatpush2.bf16.xpose.msra.mxu0 0
        %620 = vmatprep.subr.bf16.mxu0 0
        %621 = vmatpush2.bf16.xpose.msra.mxu0 0
        %622 = vmatprep.subr.bf16.mxu0 0
        %623 = vmatpush2.bf16.xpose.msra.mxu0 0
        %624 = vmatprep.subr.bf16.mxu0 0
        %625 = vmatpush2.bf16.xpose.msra.mxu0 0
        %626 = vmatprep.subr.bf16.mxu0 0
        %627 = vmatpush2.bf16.xpose.msra.mxu0 0
        %628 = vmatprep.subr.bf16.mxu0 0
        %629 = vmatpush2.bf16.xpose.msra.mxu0 0
        %630 = vmatprep.subr.bf16.mxu0 0
        %631 = vmatpush2.bf16.xpose.msra.mxu0 0
        %632 = vmatprep.mubr.bf16.mxu0 0
        %633 = vmatmul.mubr.bf16.gmra.mxu0 %v595
        %v634 = vpop.f32.mrf.mxu0
        %v635 = vadd.f32 %v578, %v634
        %v636 = vpop.f32.mrf.mxu0
        %v637 = vpop.f32.mrf.mxu0
        %v638 = vadd.f32 %v579, %v637
        %v639 = vpop.f32.mrf.mxu0
        %640 = vdwg.mxu0
        %vm641 = vcmask 113664
        %642 = vst.msk [vmem:[%s292] sm:$0xff] %vm641, %v635
        %vm643 = vcmask 111616
        %644 = vst.msk [vmem:[%s292 + $0x8] sm:$0x3f] %vm643, %v638
        %v645 = vpack.c.bf16 %v552, %v549
        %v646 = vpack.c.bf16 %v491, %v488
        %648 = vset.pattern.permute.xlu0 32
        %649 = vperm.xlu0 %648, %v488
        %v650 = vpop.permute.xlu0 %649
        %652 = vset.pattern.permute.xlu0 32
        %653 = vperm.xlu0 %652, %v491
        %v654 = vpop.permute.xlu0 %653
        %v655 = vrot.slane %v650, 1
        %v656 = vrot.slane %v654, 1
        %v657 = vsel %vm572, %v655, %v656
        %v660 = vsel %vm560, %v657, 0.0
        %v661 = vsel %vm561, %v656, 0.0
        %v663 = vshrl.u32 %v645, 16
        %v665 = vshll.u32 %v645, 16
        %v667 = vrot.slane %v665, 1
        %v668 = vor.u32 %v663, %v667
        %v670 = vshrl.u32 %v646, 16
        %v672 = vshll.u32 %v646, 16
        %v674 = vrot.slane %v672, 1
        %v675 = vor.u32 %v670, %v674
        %v677 = vsel %vm438, %v668, 0
        %v680 = vsel %vm438, %v675, 0
        %682 = vmatprep.subr.bf16.mxu0 0
        %683 = vmatpush1.bf16.xpose.msra.mxu0 0
        %684 = vmatprep.subr.bf16.mxu0 0
        %685 = vmatpush1.bf16.xpose.msra.mxu0 0
        %686 = vmatprep.subr.bf16.mxu0 0
        %687 = vmatpush1.bf16.xpose.msra.mxu0 0
        %688 = vmatprep.subr.bf16.mxu0 0
        %689 = vmatpush1.bf16.xpose.msra.mxu0 0
        %690 = vmatprep.subr.bf16.mxu0 0
        %691 = vmatpush1.bf16.xpose.msra.mxu0 0
        %692 = vmatprep.subr.bf16.mxu0 0
        %693 = vmatpush1.bf16.xpose.msra.mxu0 0
        %694 = vmatprep.subr.bf16.mxu0 0
        %695 = vmatpush1.bf16.xpose.msra.mxu0 0
        %696 = vmatprep.subr.bf16.mxu0 0
        %697 = vmatpush1.bf16.xpose.msra.mxu0 %v680
        %698 = vmatprep.subr.bf16.mxu0 0
        %699 = vmatpush2.bf16.xpose.msra.mxu0 0
        %700 = vmatprep.subr.bf16.mxu0 0
        %701 = vmatpush2.bf16.xpose.msra.mxu0 0
        %702 = vmatprep.subr.bf16.mxu0 0
        %703 = vmatpush2.bf16.xpose.msra.mxu0 0
        %704 = vmatprep.subr.bf16.mxu0 0
        %705 = vmatpush2.bf16.xpose.msra.mxu0 0
        %706 = vmatprep.subr.bf16.mxu0 0
        %707 = vmatpush2.bf16.xpose.msra.mxu0 0
        %708 = vmatprep.subr.bf16.mxu0 0
        %709 = vmatpush2.bf16.xpose.msra.mxu0 0
        %710 = vmatprep.subr.bf16.mxu0 0
        %711 = vmatpush2.bf16.xpose.msra.mxu0 0
        %712 = vmatprep.subr.bf16.mxu0 0
        %713 = vmatpush2.bf16.xpose.msra.mxu0 0
        %714 = vmatprep.mubr.bf16.mxu0 0
        %715 = vmatmul.mubr.bf16.gmra.mxu0 %v677
        %v716 = vpop.f32.mrf.mxu0
        %v717 = vadd.f32 %v660, %v716
        %v718 = vpop.f32.mrf.mxu0
        %v719 = vpop.f32.mrf.mxu0
        %v720 = vadd.f32 %v661, %v719
        %v721 = vpop.f32.mrf.mxu0
        %722 = vdwg.mxu0
        %s723 = scalar_lea.vmem %s292, 16
        %724 = vst.msk [vmem:[%s723] sm:$0xff] %vm641, %v717
        %725 = vst.msk [vmem:[%s723 + $0x8] sm:$0x3f] %vm643, %v720
        %s726 = smul.u32 2, %s22
        %p727 = scmp.lt.s32.totalorder %s726, 3
        %s728 = scalar_select %p727, %s726, 3
        %s729 = smul.addr %s728, 2
        %s730 = smul.addr %s729, 8
        %s731 = scalar_lea.vmem %s4, %s730
        // Predicated region
        $region53: #{tpu_custom_call.1} parent=35 // pred_check
          %p732 = pneg %p134
        $region54: #{tpu_custom_call.1} parent=35 // pred_check_branch
          %734 = sbr.rel (%p732) target = $region56
        $region55: #{tpu_custom_call.1} parent=35 // pred_region
          %s735 = smul.u32 2, %s22
        $region56: #{tpu_custom_call.1} parent=35 // pred_fallthru
          _
      $region36: #{tpu_custom_call.1} parent=5 // pred_fallthru
        _
      %p736 = scmp.le.s32.totalorder 2, %s17
      // Predicated region
      $region57: #{tpu_custom_call.1} parent=5 // pred_check
        %p737 = pneg %p736
      $region58: #{tpu_custom_call.1} parent=5 // pred_check_branch
        %739 = sbr.rel (%p737) target = $region60
      $region59: #{tpu_custom_call.1} parent=5 // pred_region
        %s740 = ssub.s32 %s17, 2
        // Predicated region
        $region61: #{tpu_custom_call.1} parent=59 // pred_check
          %p741 = pneg %p140
        $region62: #{tpu_custom_call.1} parent=59 // pred_check_branch
          %743 = sbr.rel (%p741) target = $region64
        $region63: #{tpu_custom_call.1} parent=59 // pred_region
          %s744 = smul.u32 2, %s23
          %p745 = scmp.lt.s32.totalorder %s744, 3
          %s746 = scalar_select %p745, %s744, 3
          %s747 = smul.addr %s746, 2
          %s748 = smul.addr %s747, 8
          %s749 = scalar_lea.vmem %s4, %s748
        $region64: #{tpu_custom_call.1} parent=59 // pred_fallthru
          _
      $region60: #{tpu_custom_call.1} parent=5 // pred_fallthru
        _
    $region6: #{tpu_custom_call.1} parent=1 // loop_footer
      %s21 = sadd.s32 1, %s17
    $region7: #{tpu_custom_call.1} parent=1 // loop_footer_branch
      %16 = sbr.rel target = $region3
    $region8: #{tpu_custom_call.1} parent=1 // loop_exit
      _
    %750 = vsyncpa [#allocation3], 1
    %s751 = scalar_lea.sflag [#allocation3], 1
    %752 = vsyncpa %s751, 1
    %753 = vsyncpa [#allocation5], 1
    %s754 = scalar_lea.sflag [#allocation5], 1
    %755 = vsyncpa %s754, 1
    %756 = vsyncpa [#allocation8], 1

</llo_original>
